<compile_context>
chip_gen: v5e
topology: v5e:2x2
jax: 0.10.0
libtpu: 0.0.40
codegen_flags: <defaults>
</compile_context>

<pallas_src>
import math

import jax
import jax.numpy as jnp
from jax.experimental import pallas as pl
from jax.experimental.pallas import tpu as pltpu


def make_pe(d_model: int, height: int, width: int) -> jnp.ndarray:
    """Replicates PositionalEncoding2D.__init__ buffer construction (float32).

    Returns the module buffer `pe` of shape (1, d_model, height, width).
    """
    if d_model % 4 != 0:
        raise ValueError("d_model must be divisible by 4")
    d_half = d_model // 2
    div_term = jnp.exp(
        jnp.arange(0.0, d_half, 2.0, dtype=jnp.float32)
        * -(math.log(10000.0) / d_half)
    )  # (d_half//2,)

    pos_w = jnp.arange(0.0, width, dtype=jnp.float32)[:, None]   # (W, 1)
    pos_h = jnp.arange(0.0, height, dtype=jnp.float32)[:, None]  # (H, 1)

    sin_w = jnp.broadcast_to(jnp.sin(pos_w * div_term).T[:, None, :],
                             (d_half // 2, height, width))
    cos_w = jnp.broadcast_to(jnp.cos(pos_w * div_term).T[:, None, :],
                             (d_half // 2, height, width))
    sin_h = jnp.broadcast_to(jnp.sin(pos_h * div_term).T[:, :, None],
                             (d_half // 2, height, width))
    cos_h = jnp.broadcast_to(jnp.cos(pos_h * div_term).T[:, :, None],
                             (d_half // 2, height, width))

    pe = jnp.zeros((d_model, height, width), dtype=jnp.float32)
    pe = pe.at[0:d_half:2, :, :].set(sin_w)
    pe = pe.at[1:d_half:2, :, :].set(cos_w)
    pe = pe.at[d_half::2, :, :].set(sin_h)
    pe = pe.at[d_half + 1::2, :, :].set(cos_h)
    return pe[None]  # (1, d_model, H, W), float32 (matches the torch buffer)


def pe_flat_from_buffer(pe: jnp.ndarray, height: int, width: int,
                        dtype) -> jnp.ndarray:
    """Crop + flatten + cast the module buffer ONCE, outside the per-call path.

    This is the glue corresponding to `self.pe[:, :, :H, :W]` in the torch
    forward; hoisting it keeps the kernel hot path at exactly one read of x,
    one read of pe and one write.
    """
    C = pe.shape[1]
    return pe[0, :, :height, :width].reshape(C, height * width).astype(dtype)


def _add_pe_kernel(x_ref, pe_ref, o_ref):
    # x_ref/pe_ref/o_ref: (tc, tl) VMEM tiles (batch dim squeezed out).
    # Edge blocks (from cdiv grids) are masked by Pallas on store, so the
    # plain elementwise add is safe for any (C, H*W).
    o_ref[...] = (x_ref[...] + pe_ref[...]).astype(o_ref.dtype)


def _sublane_quantum(dtype) -> int:
    """Packed sublane quantum: 8 for f32, 16 for bf16, 32 for int8/fp8."""
    return max(8, 32 // jnp.dtype(dtype).itemsize)


def _pick_tile(total: int, target: int, quantum: int) -> int:
    """Largest tile <= target that is a multiple of `quantum` (or the full
    extent when total <= quantum).  The grid uses pl.cdiv, so the tile does
    NOT have to divide `total` -- the trailing edge block is masked."""
    if total <= quantum:
        return total  # full extent: legal per the "(8,128)-divisible OR full dim" rule
    t = min(target, total)
    t -= t % quantum
    return max(t, quantum)


def positional_encoding_2d(x: jnp.ndarray, pe_flat: jnp.ndarray) -> jnp.ndarray:
    """x: (B, C, H, W); pe_flat: (C, H*W) already cropped/flattened.

    Returns x + pe (broadcast over batch), same semantics as the torch forward.
    """
    B, C, H, W = x.shape
    L = H * W
    assert pe_flat.shape == (C, L), (pe_flat.shape, (C, L))

    # Lane-dense view of x; contiguous reshape is a bitcast, not a copy.
    x_flat = x.reshape(B, C, L)
    pe_flat = pe_flat.astype(x.dtype)  # no-op when precomputed in x.dtype

    # ~4 MiB f32 tiles (256 sublanes x 4096 lanes); dtype-aware sublane quantum.
    tc = _pick_tile(C, 256, _sublane_quantum(x.dtype))
    tl = _pick_tile(L, 4096, 128)
    # Batch innermost: pe's block index (ci, li) is constant across consecutive
    # steps, so Pallas skips re-fetching the pe tile for every batch element.
    grid = (pl.cdiv(C, tc), pl.cdiv(L, tl), B)

    out = pl.pallas_call(
        _add_pe_kernel,
        out_shape=jax.ShapeDtypeStruct((B, C, L), x.dtype),
        grid_spec=pltpu.PrefetchScalarGridSpec(
            num_scalar_prefetch=0,
            grid=grid,
            in_specs=[
                pl.BlockSpec((pl.Squeezed(), tc, tl), lambda ci, li, b: (b, ci, li)),
                pl.BlockSpec((tc, tl), lambda ci, li, b: (ci, li)),
            ],
            out_specs=pl.BlockSpec((pl.Squeezed(), tc, tl),
                                   lambda ci, li, b: (b, ci, li)),
        ),
        input_output_aliases={0: 0},  # donate x's HBM buffer for the output
        compiler_params=pltpu.CompilerParams(
            # All axes are independent -> mark everything parallel so v7x can
            # shard across its two TensorCores even when the c/l grids are 1
            # (within each core's sequential shard the pe-tile reuse is kept).
            dimension_semantics=("parallel", "parallel", "parallel"),
            # 3 operands x 2 buffers x ~4 MiB = ~24 MiB working set; 48 MiB
            # leaves headroom and fits v7x's 64 MiB physical VMEM.
            vmem_limit_bytes=48 * 1024 * 1024,
        ),
    )(x_flat, pe_flat)

    return out.reshape(B, C, H, W)


if __name__ == "__main__":
    # Small deterministic example: batch=2, d_model=4, height=width=16.
    B, D, H, W = 2, 4, 16, 16
    key = jax.random.PRNGKey(0)
    x = jax.random.normal(key, (B, D, H, W), dtype=jnp.float32)

    pe_buffer = make_pe(D, H, W)                           # (1, D, H, W) f32, module buffer
    pe_flat = pe_flat_from_buffer(pe_buffer, H, W, x.dtype)  # done once, outside the hot path

    # Pure-JAX reference of the PyTorch forward (computed before the kernel,
    # since the kernel donates x's buffer via input_output_aliases).
    ref = x + pe_buffer[:, :, :H, :W].astype(x.dtype)

    out = positional_encoding_2d(x, pe_flat)
    out = jax.block_until_ready(out)

    assert out.shape == (B, D, H, W)
    assert jnp.allclose(out, ref, atol=1e-6, rtol=1e-6)

    print("KERNEL_OK")
</pallas_src>

<mosaic_0001>
module attributes {stable_mosaic.version = 11 : i64} {
  func.func @_add_pe_kernel(%arg0: i32, %arg1: i32, %arg2: i32, %arg3: memref<1x4x256xf32, #tpu.memory_space<vmem>>, %arg4: memref<4x256xf32, #tpu.memory_space<vmem>>, %arg5: memref<1x4x256xf32, #tpu.memory_space<vmem>>) attributes {dimension_semantics = [#tpu.dimension_semantics<parallel>, #tpu.dimension_semantics<parallel>, #tpu.dimension_semantics<parallel>], iteration_bounds = array<i64: 1, 1, 2>, scalar_prefetch = 0 : i64, scratch_operands = 0 : i64, tpu.core_type = #tpu.core_type<tc>, window_params = [{transform_indices = @transform_0, window_bounds = array<i64: 1, 4, 256>}, {transform_indices = @transform_1, window_bounds = array<i64: 4, 256>}, {transform_indices = @transform_2, window_bounds = array<i64: 1, 4, 256>}]} {
    %c0 = arith.constant 0 : index
    %c0_0 = arith.constant 0 : index
    %c0_1 = arith.constant 0 : index
    %0 = vector.load %arg3[%c0, %c0_0, %c0_1] : memref<1x4x256xf32, #tpu.memory_space<vmem>>, vector<1x4x256xf32>
    %1 = vector.shape_cast %0 : vector<1x4x256xf32> to vector<4x256xf32>
    %c0_2 = arith.constant 0 : index
    %c0_3 = arith.constant 0 : index
    %2 = vector.load %arg4[%c0_2, %c0_3] : memref<4x256xf32, #tpu.memory_space<vmem>>, vector<4x256xf32>
    %3 = arith.addf %1, %2 : vector<4x256xf32>
    %c0_4 = arith.constant 0 : index
    %c0_5 = arith.constant 0 : index
    %c0_6 = arith.constant 0 : index
    %4 = vector.load %arg5[%c0_4, %c0_5, %c0_6] : memref<1x4x256xf32, #tpu.memory_space<vmem>>, vector<1x4x256xf32>
    %5 = vector.shape_cast %4 : vector<1x4x256xf32> to vector<4x256xf32>
    %6 = vector.shape_cast %3 : vector<4x256xf32> to vector<1x4x256xf32>
    tpu.vector_store %arg5[%c0_4, %c0_5, %c0_6], %6 {strides = array<i32>} : memref<1x4x256xf32, #tpu.memory_space<vmem>>, vector<1x4x256xf32>,
    return
  }
  func.func @transform_0(%arg0: i32, %arg1: i32, %arg2: i32) -> (i32, i32, i32) {
    %c0_i32 = arith.constant 0 : i32
    return %arg2, %arg0, %arg1 : i32, i32, i32
  }
  func.func @transform_1(%arg0: i32, %arg1: i32, %arg2: i32) -> (i32, i32) {
    %c0_i32 = arith.constant 0 : i32
    return %arg0, %arg1 : i32, i32
  }
  func.func @transform_2(%arg0: i32, %arg1: i32, %arg2: i32) -> (i32, i32, i32) {
    %c0_i32 = arith.constant 0 : i32
    return %arg2, %arg0, %arg1 : i32, i32, i32
  }
}

</mosaic_0001>

<llo_original>
// kernel: tpu_custom_call.1
$region0: #{tpu_custom_call.1}
  #allocation0 [shape = 'u32[]', space=smem, size = 0x4, offset = 0x4, fixed_abs, tag = 'smem constant byte address 0x4 - core index']
  #allocation1 [shape = 'u32[72,128]{1,0:T(1,128)}', space=vmem, size = 0x9000, scoped, tag = 'internal scratch']
  %s0 = inlined_call_operand.hbm [shape: f32[2,4,256], index: 0, kind: input, shape index: {}, may-alias: {0,2}]
  %s1 = inlined_call_operand.vmem [shape: f32[4,256], index: 1, kind: input, shape index: {}]
  %s2 = inlined_call_operand.hbm [shape: f32[2,4,256], index: 2, kind: output, shape index: {}, may-alias: {0,2}]
  %s3 = sld [smem:[#allocation0]]
  $region45: #{tpu_custom_call.1} parent=0
    _
  %s5 = ssub.s32 1, %s3
  %s6 = scalar_select 0, %s5, %s3
  $region1: #{tpu_custom_call.1} parent=0
    #allocation2 [shape = 'u8[8192]{0}', space=vmem, size = 0x2000, scoped, tag = 'input window, operand 0']
    #allocation3 [shape = 's32[2]{0}', space=sflag, size = 0x8, scoped, tag = 'scoped memory for tpu_custom_call.1']
    #allocation4 [shape = 's32[2]{0}', space=sflag, size = 0x8, scoped, tag = 'scoped memory for tpu_custom_call.1']
    #allocation5 [shape = 'u8[8192]{0}', space=vmem, size = 0x2000, scoped, tag = 'output window, operand 0']
    %7 = vsyncpa [#allocation3], 0
    %s8 = scalar_lea.sflag [#allocation3], 1
    %9 = vsyncpa %s8, 0
    %10 = vsyncpa [#allocation4], 0
    %s11 = scalar_lea.sflag [#allocation4], 1
    %12 = vsyncpa %s11, 0
    loop: start=0, step=1, limit=4
    $region2: #{tpu_custom_call.1} parent=1 // loop_pre_header
      _
    $region3: #{tpu_custom_call.1} parent=1 // loop_header
      %s14 = sphi 0, %s18
      %p15 = scmp.ge.s32.totalorder %s14, 4
      %s21 = sphi 0, %s40
      %s22 = sphi 0, %s36
      %s23 = sphi 0, %s32
      %s24 = sphi 0, %s21
      %s25 = sphi 0, %s22
      %s26 = sphi 0, %s23
      %s27 = sphi 0, %s24
      %s28 = sphi 0, %s25
      %s29 = sphi 0, %s26
      %s47 = sphi 0, %s49
      %s50 = sphi 0, %s47
      %s51 = sphi 0, %s50
      %s67 = sphi 0, %s51
      %s75 = sphi 0, %s77
      %s78 = sphi 0, %s75
      %s79 = sphi 0, %s78
      %s95 = sphi 0, %s79
      %s105 = sphi 0, %s107
      %s108 = sphi 0, %s105
      %s109 = sphi 0, %s108
      %s125 = sphi 0, %s109
    $region4: #{tpu_custom_call.1} parent=1 // loop_header_branch
      %17 = sbr.rel (%p15) target = $region8
    $region5: #{tpu_custom_call.1} parent=1 // loop_body
      %s19 = ssub.s32 %s14, 1
      %s20 = ssub.s32 %s14, 2
      %s30 = sadd.s32 1, %s23
      %p31 = scmp.ge.s32.totalorder %s30, 2
      %s32 = scalar_select %p31, 0, %s30
      %s33 = sadd.s32 1, %s22
      %s34 = scalar_select %p31, %s33, %s22
      %p35 = scmp.ge.s32.totalorder %s34, 1
      %s36 = scalar_select %p35, 0, %s34
      %s37 = sadd.s32 1, %s21
      %s38 = scalar_select %p35, %s37, %s21
      %p39 = scmp.ge.s32.totalorder %s38, 1
      %s40 = scalar_select %p39, 0, %s38
      %s41 = ssub.s32 %s23, %s32
      %s42 = ssub.s32 %s21, %s40
      %s43 = sor.u32 %s41, %s42
      %s44 = ssub.s32 %s22, %s36
      %s45 = sor.u32 %s43, %s44
      %p46 = scmp.eq.s32.totalorder %s45, 0
      %s48 = sadd.s32 %s47, 1
      %s49 = scalar_select %p46, %s47, %s48
      %p52 = pneg %p46
      %p53 = scmp.eq.s32.totalorder %s14, 1
      %p54 = por %p52, %p53
      %p55 = scmp.ne.s32.totalorder %s47, %s50
      %p56 = scmp.eq.s32.totalorder %s14, 0
      %p57 = por %p55, %p56
      %p58 = scmp.ne.s32.totalorder %s47, %s50
      %p59 = scmp.eq.s32.totalorder %s19, 1
      %p60 = por %p58, %p59
      %p61 = scmp.ne.s32.totalorder %s50, %s51
      %p62 = scmp.eq.s32.totalorder %s19, 0
      %p63 = por %p61, %p62
      %p64 = scmp.ne.s32.totalorder %s50, %s51
      %p65 = scmp.eq.s32.totalorder %s20, 1
      %p66 = por %p64, %p65
      %p68 = scmp.ne.s32.totalorder %s51, %s67
      %p69 = scmp.eq.s32.totalorder %s20, 0
      %p70 = por %p68, %p69
      %s71 = ssub.s32 %s21, %s40
      %s72 = ssub.s32 %s22, %s36
      %s73 = sor.u32 %s71, %s72
      %p74 = scmp.eq.s32.totalorder %s73, 0
      %s76 = sadd.s32 %s75, 1
      %s77 = scalar_select %p74, %s75, %s76
      %p80 = pneg %p74
      %p81 = scmp.eq.s32.totalorder %s14, 1
      %p82 = por %p80, %p81
      %p83 = scmp.ne.s32.totalorder %s75, %s78
      %p84 = scmp.eq.s32.totalorder %s14, 0
      %p85 = por %p83, %p84
      %p86 = scmp.ne.s32.totalorder %s75, %s78
      %p87 = scmp.eq.s32.totalorder %s19, 1
      %p88 = por %p86, %p87
      %p89 = scmp.ne.s32.totalorder %s78, %s79
      %p90 = scmp.eq.s32.totalorder %s19, 0
      %p91 = por %p89, %p90
      %p92 = scmp.ne.s32.totalorder %s78, %s79
      %p93 = scmp.eq.s32.totalorder %s20, 1
      %p94 = por %p92, %p93
      %p96 = scmp.ne.s32.totalorder %s79, %s95
      %p97 = scmp.eq.s32.totalorder %s20, 0
      %p98 = por %p96, %p97
      %s99 = ssub.s32 %s23, %s32
      %s100 = ssub.s32 %s21, %s40
      %s101 = sor.u32 %s99, %s100
      %s102 = ssub.s32 %s22, %s36
      %s103 = sor.u32 %s101, %s102
      %p104 = scmp.eq.s32.totalorder %s103, 0
      %s106 = sadd.s32 %s105, 1
      %s107 = scalar_select %p104, %s105, %s106
      %p110 = pneg %p104
      %p111 = scmp.eq.s32.totalorder %s14, 1
      %p112 = por %p110, %p111
      %p113 = scmp.ne.s32.totalorder %s105, %s108
      %p114 = scmp.eq.s32.totalorder %s14, 0
      %p115 = por %p113, %p114
      %p116 = scmp.ne.s32.totalorder %s105, %s108
      %p117 = scmp.eq.s32.totalorder %s19, 1
      %p118 = por %p116, %p117
      %p119 = scmp.ne.s32.totalorder %s108, %s109
      %p120 = scmp.eq.s32.totalorder %s19, 0
      %p121 = por %p119, %p120
      %p122 = scmp.ne.s32.totalorder %s108, %s109
      %p123 = scmp.eq.s32.totalorder %s20, 1
      %p124 = por %p122, %p123
      %p126 = scmp.ne.s32.totalorder %s109, %s125
      %p127 = scmp.eq.s32.totalorder %s20, 0
      %p128 = por %p126, %p127
      %p129 = scmp.le.s32.totalorder 1, %s14
      %p130 = scmp.lt.s32.totalorder %s14, 3
      %p131 = pnand %p129, %p130
      %p132 = pneg %p131
      // Predicated region
      $region9: #{tpu_custom_call.1} parent=5 // pred_check
        _
      $region10: #{tpu_custom_call.1} parent=5 // pred_check_branch
        %134 = sbr.rel (%p131) target = $region12
      $region11: #{tpu_custom_call.1} parent=5 // pred_region
        %s135 = ssub.s32 %s14, 1
        // Predicated region
        $region13: #{tpu_custom_call.1} parent=11 // pred_check
          %p136 = pneg %p91
        $region14: #{tpu_custom_call.1} parent=11 // pred_check_branch
          %138 = sbr.rel (%p136) target = $region16
        $region15: #{tpu_custom_call.1} parent=11 // pred_region
          %s139 = smul.u32 2, %s25
          %p140 = scmp.lt.s32.totalorder %s24, 0
          %s141 = scalar_select %p140, %s24, 0
          %p142 = scmp.lt.s32.totalorder %s139, 1
          %s143 = scalar_select %p142, %s139, 1
          %s144 = smul.addr %s141, 2
          %s145 = sadd.s32 %s143, %s144
          %s146 = smul.addr %s145, 4
          %s147 = scalar_lea.vmem %s1, %s146
          %s148 = smul.u32 2, %s25
        $region16: #{tpu_custom_call.1} parent=11 // pred_fallthru
          _
      $region12: #{tpu_custom_call.1} parent=5 // pred_fallthru
        _
      %p149 = scmp.lt.s32.totalorder %s14, 2
      // Predicated region
      $region17: #{tpu_custom_call.1} parent=5 // pred_check
        %p150 = pneg %p149
      $region18: #{tpu_custom_call.1} parent=5 // pred_check_branch
        %152 = sbr.rel (%p150) target = $region20
      $region19: #{tpu_custom_call.1} parent=5 // pred_region
        // Predicated region
        $region21: #{tpu_custom_call.1} parent=19 // pred_check
          %p153 = pneg %p57
        $region22: #{tpu_custom_call.1} parent=19 // pred_check_branch
          %155 = sbr.rel (%p153) target = $region24
        $region23: #{tpu_custom_call.1} parent=19 // pred_region
          %s156 = sand.u32 %s47, 1
          %s157 = scalar_lea.sflag [#allocation3], %s156
          %s158 = sand.u32 %s47, 1
          %s159 = smul.addr %s158, 8
          %s160 = scalar_lea.vmem [#allocation2], %s159
          %s161 = smul.u32 2, %s22
          %163 = vsyncadd %s157, 0
          %s164 = smul.addr %s21, 2
          %s165 = sadd.s32 %s161, %s164
          %s166 = smul.addr %s23, 2
          %s167 = sadd.s32 %s165, %s166
          %s168 = smul.addr %s167, 4
          %s169 = scalar_lea.hbm %s0, %s168
          %s171 = sshll.u32 %s169, 4
          %s172 = int_to_ptr.hbm [resolvable:$true] %s171
          %s173 = sshll.u32 %s160, 4
          %s174 = int_to_ptr.vmem [resolvable:$true] %s173
          %176 = dma.hbm_to_vmem [thread:$0]  %s172, 128, %s174, %s157
        $region24: #{tpu_custom_call.1} parent=19 // pred_fallthru
          _
      $region20: #{tpu_custom_call.1} parent=5 // pred_fallthru
        _
      %p177 = scmp.le.s32.totalorder 1, %s14
      %p178 = scmp.lt.s32.totalorder %s14, 3
      %p179 = pnand %p177, %p178
      %p180 = pneg %p179
      // Predicated region
      $region25: #{tpu_custom_call.1} parent=5 // pred_check
        _
      $region26: #{tpu_custom_call.1} parent=5 // pred_check_branch
        %182 = sbr.rel (%p179) target = $region28
      $region27: #{tpu_custom_call.1} parent=5 // pred_region
        %s183 = ssub.s32 %s14, 1
        %s184 = sand.u32 %s50, 1
        %s185 = scalar_lea.sflag [#allocation3], %s184
        %s186 = sand.u32 %s50, 1
        %s187 = smul.addr %s186, 8
        %s188 = scalar_lea.vmem [#allocation2], %s187
        // Predicated region
        $region29: #{tpu_custom_call.1} parent=27 // pred_check
          %p189 = pneg %p63
        $region30: #{tpu_custom_call.1} parent=27 // pred_check_branch
          %191 = sbr.rel (%p189) target = $region32
        $region31: #{tpu_custom_call.1} parent=27 // pred_region
          %193 = dma.done %s185, 128
        $region32: #{tpu_custom_call.1} parent=27 // pred_fallthru
          _
        %s194 = sand.u32 %s50, 1
        %s195 = scalar_lea.sflag [#allocation3], %s194
        %s196 = sand.u32 %s50, 1
        %s197 = smul.addr %s196, 8
        %s198 = scalar_lea.vmem [#allocation2], %s197
        %p199 = pneg %p63
        %p200 = pneg %p60
        %s201 = smul.u32 2, %s25
        %p202 = scmp.lt.s32.totalorder %s24, 0
        %s203 = scalar_select %p202, %s24, 0
        %p204 = scmp.lt.s32.totalorder %s201, 1
        %s205 = scalar_select %p204, %s201, 1
        %s206 = smul.addr %s203, 2
        %s207 = sadd.s32 %s205, %s206
        %s208 = smul.addr %s207, 4
        %s209 = scalar_lea.vmem %s1, %s208
        %p210 = pneg %p91
        %p211 = pneg %p88
        %p212 = pneg %p121
        %p213 = pneg %p118
        %s214 = sand.u32 %s108, 1
        %s215 = scalar_lea.sflag [#allocation4], %s214
        %s216 = sand.u32 %s108, 1
        %s217 = smul.addr %s216, 8
        %s218 = scalar_lea.vmem [#allocation5], %s217
        %s219 = smul.u32 2, %s25
        %s220 = smul.u32 2, %s25
        %p221 = scmp.lt.s32.totalorder %s24, 0
        %s222 = scalar_select %p221, %s24, 0
        %p223 = scmp.lt.s32.totalorder %s220, 1
        %s224 = scalar_select %p223, %s220, 1
        %s225 = smul.addr %s222, 2
        %s226 = sadd.s32 %s224, %s225
        %s227 = smul.addr %s226, 4
        %s228 = scalar_lea.vmem %s1, %s227
        %s229 = smul.u32 2, %s25
        %s230 = smul.u32 2, %s25
        %v231 = vld [vmem:[%s188] sm:$0xff]
        %v232 = vld [vmem:[%s228] sm:$0xff]
        %v233 = vadd.f32 %v231, %v232
        %234 = vst [vmem:[%s218] sm:$0xff] %v233
        %s235 = sand.u32 %s108, 1
        %s236 = scalar_lea.sflag [#allocation4], %s235
        %s237 = sand.u32 %s108, 1
        %s238 = smul.addr %s237, 8
        %s239 = scalar_lea.vmem [#allocation5], %s238
        // Predicated region
        $region33: #{tpu_custom_call.1} parent=27 // pred_check
          %p240 = pneg %p118
        $region34: #{tpu_custom_call.1} parent=27 // pred_check_branch
          %242 = sbr.rel (%p240) target = $region36
        $region35: #{tpu_custom_call.1} parent=27 // pred_region
          %s243 = smul.u32 2, %s25
          %245 = vsyncadd %s236, 0
          %s246 = smul.addr %s24, 2
          %s247 = sadd.s32 %s243, %s246
          %s248 = smul.addr %s26, 2
          %s249 = sadd.s32 %s247, %s248
          %s250 = smul.addr %s249, 4
          %s251 = scalar_lea.hbm %s2, %s250
          %s253 = sshll.u32 %s239, 4
          %s254 = int_to_ptr.vmem [resolvable:$true] %s253
          %s255 = sshll.u32 %s251, 4
          %s256 = int_to_ptr.hbm [resolvable:$true] %s255
          %258 = dma.vmem_to_hbm [thread:$0]  %s254, 128, %s256, %s236
        $region36: #{tpu_custom_call.1} parent=27 // pred_fallthru
          _
      $region28: #{tpu_custom_call.1} parent=5 // pred_fallthru
        _
      %p259 = scmp.le.s32.totalorder 2, %s14
      // Predicated region
      $region37: #{tpu_custom_call.1} parent=5 // pred_check
        %p260 = pneg %p259
      $region38: #{tpu_custom_call.1} parent=5 // pred_check_branch
        %262 = sbr.rel (%p260) target = $region40
      $region39: #{tpu_custom_call.1} parent=5 // pred_region
        %s263 = ssub.s32 %s14, 2
        // Predicated region
        $region41: #{tpu_custom_call.1} parent=39 // pred_check
          %p264 = pneg %p124
        $region42: #{tpu_custom_call.1} parent=39 // pred_check_branch
          %266 = sbr.rel (%p264) target = $region44
        $region43: #{tpu_custom_call.1} parent=39 // pred_region
          %s267 = sand.u32 %s109, 1
          %s268 = scalar_lea.sflag [#allocation4], %s267
          %s269 = sand.u32 %s109, 1
          %s270 = smul.addr %s269, 8
          %s271 = scalar_lea.vmem [#allocation5], %s270
          %273 = dma.done %s268, 128
        $region44: #{tpu_custom_call.1} parent=39 // pred_fallthru
          _
      $region40: #{tpu_custom_call.1} parent=5 // pred_fallthru
        _
    $region6: #{tpu_custom_call.1} parent=1 // loop_footer
      %s18 = sadd.s32 1, %s14
    $region7: #{tpu_custom_call.1} parent=1 // loop_footer_branch
      %13 = sbr.rel target = $region3
    $region8: #{tpu_custom_call.1} parent=1 // loop_exit
      _
    %274 = vsyncpa [#allocation3], 1
    %s275 = scalar_lea.sflag [#allocation3], 1
    %276 = vsyncpa %s275, 1
    %277 = vsyncpa [#allocation4], 1
    %s278 = scalar_lea.sflag [#allocation4], 1
    %279 = vsyncpa %s278, 1

</llo_original>
